<compile_context>
chip_gen: v5e
topology: v5e:2x2
jax: 0.10.0
libtpu: 0.0.40
codegen_flags: <defaults>
</compile_context>

<pallas_src>
import functools

import jax
import jax.numpy as jnp
from jax.experimental import pallas as pl
from jax.experimental.pallas import tpu as pltpu

_LANES = 128


def _round_up(x, m):
    return ((x + m - 1) // m) * m


# ---------------------------------------------------------------------------
# Kernel: one batch tile = pooling + text head + image head + fused classifier
# ---------------------------------------------------------------------------
def _late_fusion_kernel(fusion_method, pooling_type, offs, dims, *refs):
    if pooling_type == 'cls':
        hidden_ref, img_ref, p_ref, out_ref = refs
        mask_ref = None
    else:
        hidden_ref, mask_ref, img_ref, p_ref, out_ref = refs
    HP, CHW, DP, NP = dims
    off_wt, off_wi1, off_bi1, off_wi2, off_b0, off_b1 = offs

    # ----- text pooling (tiny masked reduce stays on the VPU/XLU, off the MXU)
    if pooling_type == 'cls':
        pooled = hidden_ref[...].astype(jnp.float32)                  # [TB, HP]
    else:
        hidden = hidden_ref[...].astype(jnp.float32)                  # [TB, S, HP]
        m = mask_ref[...]                                             # [TB, S]
        if pooling_type == 'mean':
            summed = jnp.sum(hidden * m[:, :, None], axis=1)          # [TB, HP]
            denom = jnp.maximum(jnp.sum(m, axis=-1, keepdims=True), 1e-9)
            pooled = summed / denom                                   # exact divide
        elif pooling_type == 'max':
            # NOTE: finite -1e30 fill (all-masked rows give -1e30, not -inf).
            pooled = jnp.max(
                jnp.where(m[:, :, None] > 0.0, hidden, jnp.float32(-1e30)),
                axis=1)
        else:
            raise ValueError(f'Unsupported pooling type: {pooling_type}')

    # ----- text head (fusion layer already folded into wt / b0) -------------
    wt = p_ref[off_wt:off_wt + HP, :]                                 # [HP, NP]
    text_part = jnp.dot(pooled, wt, preferred_element_type=jnp.float32)

    # ----- image branch: GAP + Linear(C, D) fused into one MXU matmul -------
    img = img_ref[...].astype(jnp.float32)                            # [TB, CHW]
    wi1 = p_ref[off_wi1:off_wi1 + CHW, :]                             # [CHW, DP]
    bi1 = p_ref[off_bi1:off_bi1 + 1, :]                               # [1, DP]
    h = jnp.maximum(
        jnp.dot(img, wi1, preferred_element_type=jnp.float32) + bi1, 0.0)
    wi2 = p_ref[off_wi2:off_wi2 + DP, :]                              # [DP, NP]
    img_part = jnp.dot(h, wi2, preferred_element_type=jnp.float32)    # [TB, NP]

    # ----- fusion ------------------------------------------------------------
    b0 = p_ref[off_b0:off_b0 + 1, :]                                  # [1, NP]
    if fusion_method == 'max':
        b1 = p_ref[off_b1:off_b1 + 1, :]
        logits = jnp.maximum(text_part + b0, img_part + b1)
    else:   # 'concat' / 'sum' / 'weighted' are folded into wt / wi2 / b0
        logits = text_part + img_part + b0

    out_ref[...] = logits.astype(out_ref.dtype)                       # [TB, NP] dense store


# ---------------------------------------------------------------------------
# Parameter folding + packing (wrapper side, pure JAX)
# ---------------------------------------------------------------------------
def _pack_params(params, fusion_method, text_weight, img_weight, HW, HP, DP, NP):
    """Fold the fusion layer into the branch heads (exact for concat/sum/weighted),
    fold GAP into the first image linear, and pack everything into one
    lane-dense [rows, 128] f32 slab (single DMA, 8-row-aligned static slices)."""
    w_text, b_text = params['w_text'], params['b_text']     # [H,2], [1,2]
    w_img1, b_img1 = params['w_img1'], params['b_img1']     # [C,D], [1,D]
    w_img2, b_img2 = params['w_img2'], params['b_img2']     # [D,2], [1,2]
    H = w_text.shape[0]
    C, D = w_img1.shape
    n_cls = w_text.shape[1]

    if fusion_method == 'concat':
        wf, bf = params['w_fuse'], params['b_fuse']          # [4,2], [1,2]
        wt = w_text @ wf[:n_cls]
        wi2 = w_img2 @ wf[n_cls:]
        b0 = b_text @ wf[:n_cls] + b_img2 @ wf[n_cls:] + bf
        b1 = jnp.zeros_like(b0)
        n_out = wf.shape[1]
    elif fusion_method == 'sum':
        wt, wi2 = w_text, w_img2
        b0, b1 = b_text + b_img2, jnp.zeros_like(b_text)
        n_out = n_cls
    elif fusion_method == 'weighted':
        wt, wi2 = text_weight * w_text, img_weight * w_img2
        b0 = text_weight * b_text + img_weight * b_img2
        b1 = jnp.zeros_like(b0)
        n_out = n_cls
    elif fusion_method == 'max':
        wt, wi2 = w_text, w_img2                             # max is non-linear: keep split
        b0, b1 = b_text, b_img2
        n_out = n_cls
    else:
        raise ValueError(f'Unsupported fusion method: {fusion_method}')

    # GAP (1/HW mean over spatial) folded into the first image linear:
    # images.reshape(B, C*HW) @ repeat(w_img1/HW, HW)  ==  GAP(images) @ w_img1.
    CHW = C * HW
    wi1_exp = jnp.repeat(w_img1, HW, axis=0) * jnp.float32(1.0 / HW)  # [CHW, D]

    off_wt = 0
    off_wi1 = HP
    off_bi1 = off_wi1 + _round_up(CHW, 8)
    off_wi2 = off_bi1 + 8
    off_b0 = off_wi2 + DP
    off_b1 = off_b0 + 8
    rows = off_b1 + 8

    slab = jnp.zeros((rows, NP), jnp.float32)
    slab = slab.at[off_wt:off_wt + H, :n_out].set(wt)
    slab = slab.at[off_wi1:off_wi1 + CHW, :D].set(wi1_exp)
    slab = slab.at[off_bi1, :D].set(b_img1[0])
    slab = slab.at[off_wi2:off_wi2 + D, :n_out].set(wi2)
    slab = slab.at[off_b0, :n_out].set(b0[0])
    slab = slab.at[off_b1, :n_out].set(b1[0])

    offs = (off_wt, off_wi1, off_bi1, off_wi2, off_b0, off_b1)
    dims = (HP, CHW, DP, NP)
    return slab, offs, dims, n_out


# ---------------------------------------------------------------------------
# Generation-aware tiling
# ---------------------------------------------------------------------------
def _tpu_vmem_and_cores():
    """VMEM capacity (bytes) and a TensorCores-per-chip estimate."""
    vmem_cap = 64 << 20            # conservative default = v7x per-TC VMEM
    n_cores = 1
    try:
        info = pltpu.get_tpu_info()
        vmem_cap = int(getattr(info, 'vmem_capacity_bytes', vmem_cap))
    except Exception:
        pass
    try:
        kind = jax.devices()[0].device_kind.lower()
        if 'v7' in kind:           # v7x: 2 TensorCores per chip
            n_cores = 2
    except Exception:
        pass
    return vmem_cap, n_cores


def _pick_batch_tile(B, per_batch_bytes, vmem_budget, n_cores):
    """Largest batch tile that fits the VMEM budget and divides B.  On
    multi-TensorCore chips (v7x) keep the grid length >= n_cores so the
    'parallel' batch axis can shard; on v5e/v6e a single grid step is best."""
    cap = max(1, int(vmem_budget // max(per_batch_bytes, 1)))
    if n_cores > 1 and B >= 2 * n_cores:
        cap = min(cap, max(1, B // n_cores))
    cap = min(cap, B)
    if cap == B:
        return B
    div, div16, div8 = 1, 0, 0
    for tb in range(cap, 0, -1):
        if B % tb == 0:
            if div == 1:
                div = tb                       # largest divisor <= cap
            if tb % 16 == 0 and div16 == 0:
                div16 = tb                     # bf16-tile-aligned sublanes
                break
            if tb % 8 == 0 and div8 == 0:
                div8 = tb
    return div16 or div8 or div


# ---------------------------------------------------------------------------
# Forward wrapper
# ---------------------------------------------------------------------------
def late_fusion_forward(input_ids, attention_mask, images, params,
                        fusion_method='concat', pooling_type='cls',
                        text_weight=0.5, img_weight=0.5):
    B, S = input_ids.shape
    _, C, Hs, Ws = images.shape
    HW = Hs * Ws
    CHW = C * HW
    H = params['embed'].shape[1]
    D = params['w_img1'].shape[1]
    n_cls = params['w_text'].shape[1]
    n_fuse = params['w_fuse'].shape[1] if fusion_method == 'concat' else n_cls

    HP = _round_up(H, _LANES)                 # lane-dense hidden width
    DP = _round_up(D, _LANES)                 # lane-dense image-head hidden
    NP = _round_up(max(n_cls, n_fuse), _LANES)

    # Glue: embedding lookup stands in for the pretrained text-encoder output.
    # TODO(synk): pretrained BERT / ResNet50 backbones have no in-script
    # equivalent; a synthetic token-embedding table + small heads stand in for
    # them (at real sizes the gather would move in-kernel via
    # PrefetchScalarGridSpec + pl.Element row gather, with bf16 MXU heads).
    embed_p = jnp.pad(params['embed'], ((0, 0), (0, HP - H)))
    if pooling_type == 'cls':
        hidden = jnp.take(embed_p, input_ids[:, 0], axis=0)           # [B, HP]
    else:
        hidden = jnp.take(embed_p, input_ids, axis=0)                 # [B, S, HP]
    hidden = hidden.astype(jnp.bfloat16)   # halve the HBM stream; f32 accum in-kernel

    img = images.reshape(B, CHW).astype(jnp.bfloat16)                 # [B, CHW]
    mask = attention_mask.astype(jnp.float32)                         # [B, S]

    slab, offs, dims, n_out = _pack_params(params, fusion_method,
                                           float(text_weight), float(img_weight),
                                           HW, HP, DP, NP)

    # ----- VMEM-budget-driven batch tiling (generation-aware caps) ----------
    vmem_cap, n_cores = _tpu_vmem_and_cores()
    slab_bytes = 4 * slab.size
    hid_row = (S * HP if pooling_type != 'cls' else HP) * 2           # bf16
    mask_row = S * 4 if pooling_type != 'cls' else 0
    per_batch = 2 * (hid_row + mask_row + CHW * 2 + NP * 4)           # double-buffered
    headroom = 6 << 20
    usable = (vmem_cap * 7) // 8
    budget = max(usable - 2 * slab_bytes - headroom, 1 << 20)
    TB = _pick_batch_tile(B, per_batch, budget, n_cores)
    grid = (B // TB,)

    need = TB * per_batch + 2 * slab_bytes + headroom
    vmem_limit = int(min(max(need, 16 << 20), usable))

    kernel = functools.partial(_late_fusion_kernel, fusion_method, pooling_type,
                               offs, dims)

    operands = [hidden]
    if pooling_type == 'cls':
        in_specs = [pl.BlockSpec((TB, HP), lambda b: (b, 0))]
    else:
        in_specs = [pl.BlockSpec((TB, S, HP), lambda b: (b, 0, 0))]
        operands.append(mask)
        in_specs.append(pl.BlockSpec((TB, S), lambda b: (b, 0)))
    operands += [img, slab]
    in_specs += [pl.BlockSpec((TB, CHW), lambda b: (b, 0)),
                 pl.BlockSpec(slab.shape, lambda b: (0, 0))]
    out_spec = pl.BlockSpec((TB, NP), lambda b: (b, 0))

    out_padded = pl.pallas_call(
        kernel,
        out_shape=jax.ShapeDtypeStruct((B, NP), jnp.float32),
        grid_spec=pltpu.PrefetchScalarGridSpec(
            num_scalar_prefetch=0,
            grid=grid,
            in_specs=in_specs,
            out_specs=out_spec),
        compiler_params=pltpu.CompilerParams(
            dimension_semantics=("parallel",),
            vmem_limit_bytes=vmem_limit),
    )(*operands)

    return out_padded[:, :n_out]                                      # [B, 2]


# ---------------------------------------------------------------------------
# Pure-JAX reference (mirrors the PyTorch forward) and parameter init
# ---------------------------------------------------------------------------
def late_fusion_reference(input_ids, attention_mask, images, params,
                          fusion_method='concat', pooling_type='cls',
                          text_weight=0.5, img_weight=0.5):
    hidden = jnp.take(params['embed'], input_ids, axis=0)
    if pooling_type == 'cls':
        pooled = hidden[:, 0, :]
    elif pooling_type == 'mean':
        m = attention_mask.astype(jnp.float32)[:, :, None]
        pooled = (hidden * m).sum(1) / jnp.maximum(m.sum(1), 1e-9)
    elif pooling_type == 'max':
        m = attention_mask.astype(jnp.float32)[:, :, None]
        pooled = jnp.max(jnp.where(m > 0, hidden, -1e30), axis=1)
    else:
        raise ValueError(pooling_type)
    text_logits = pooled @ params['w_text'] + params['b_text']
    B, C = images.shape[:2]
    feat = images.reshape(B, C, -1).mean(-1)
    h = jax.nn.relu(feat @ params['w_img1'] + params['b_img1'])
    img_logits = h @ params['w_img2'] + params['b_img2']
    if fusion_method == 'concat':
        cat = jnp.concatenate([text_logits, img_logits], axis=1)
        return cat @ params['w_fuse'] + params['b_fuse']
    if fusion_method == 'sum':
        return text_logits + img_logits
    if fusion_method == 'max':
        return jnp.maximum(text_logits, img_logits)
    if fusion_method == 'weighted':
        return text_weight * text_logits + img_weight * img_logits
    raise ValueError(fusion_method)


def init_params(key, vocab=100, hidden=32, channels=4, img_feat=16, num_classes=2):
    ks = jax.random.split(key, 5)
    return {
        # synthetic "pretrained" text encoder: token-embedding table
        'embed': 0.5 * jax.random.normal(ks[0], (vocab, hidden), jnp.float32),
        # text classifier Linear(hidden, 2)  (stored [in, out])
        'w_text': 0.5 * jax.random.normal(ks[1], (hidden, num_classes), jnp.float32),
        'b_text': jnp.zeros((1, num_classes), jnp.float32),
        # image head: Linear(C, D) -> ReLU -> Linear(D, 2)
        'w_img1': 0.5 * jax.random.normal(ks[2], (channels, img_feat), jnp.float32),
        'b_img1': jnp.zeros((1, img_feat), jnp.float32),
        'w_img2': 0.5 * jax.random.normal(ks[3], (img_feat, num_classes), jnp.float32),
        'b_img2': jnp.zeros((1, num_classes), jnp.float32),
        # fusion_layer = nn.Linear(4, 2): weight ~ N(0, 0.02), bias = 0 (per spec)
        'w_fuse': 0.02 * jax.random.normal(ks[4], (2 * num_classes, num_classes),
                                           jnp.float32),
        'b_fuse': jnp.zeros((1, num_classes), jnp.float32),
    }


if __name__ == "__main__":
    key = jax.random.PRNGKey(0)
    k_ids, k_img, k_param = jax.random.split(key, 3)

    B, S, H_TXT = 2, 8, 32          # batch, seq len, text hidden
    C, Hs, Ws = 4, 16, 16           # image channels / spatial (NCHW)

    input_ids = jax.random.randint(k_ids, (B, S), 0, 100, dtype=jnp.int32)
    attention_mask = jnp.ones((B, S), dtype=jnp.int32)
    images = jax.random.normal(k_img, (B, C, Hs, Ws), jnp.float32)

    params = init_params(k_param, vocab=100, hidden=H_TXT, channels=C, img_feat=16)

    # Default config of the PyTorch module: fusion='concat', pooling='cls'
    out = late_fusion_forward(input_ids, attention_mask, images, params,
                              fusion_method='concat', pooling_type='cls')
    out = jax.block_until_ready(out)
    ref = late_fusion_reference(input_ids, attention_mask, images, params,
                                fusion_method='concat', pooling_type='cls')
    assert out.shape == (B, 2) and out.dtype == jnp.float32
    assert jnp.allclose(out, ref, rtol=5e-2, atol=1e-2), (out, ref)

    # Second variant: masked-mean pooling (VPU path) + weighted fusion
    out2 = late_fusion_forward(input_ids, attention_mask, images, params,
                               fusion_method='weighted', pooling_type='mean',
                               text_weight=0.3, img_weight=0.7)
    out2 = jax.block_until_ready(out2)
    ref2 = late_fusion_reference(input_ids, attention_mask, images, params,
                                 fusion_method='weighted', pooling_type='mean',
                                 text_weight=0.3, img_weight=0.7)
    assert jnp.allclose(out2, ref2, rtol=5e-2, atol=1e-2), (out2, ref2)

    print("KERNEL_OK")
</pallas_src>

<mosaic_0001>
module attributes {stable_mosaic.version = 11 : i64} {
  func.func @_late_fusion_kernel(%arg0: i32, %arg1: memref<2x128xbf16, #tpu.memory_space<vmem>>, %arg2: memref<2x1024xbf16, #tpu.memory_space<vmem>>, %arg3: memref<1304x128xf32, #tpu.memory_space<vmem>>, %arg4: memref<2x128xf32, #tpu.memory_space<vmem>>) attributes {dimension_semantics = [#tpu.dimension_semantics<parallel>], iteration_bounds = array<i64: 1>, scalar_prefetch = 0 : i64, scratch_operands = 0 : i64, tpu.core_type = #tpu.core_type<tc>, window_params = [{transform_indices = @transform_0, window_bounds = array<i64: 2, 128>}, {transform_indices = @transform_1, window_bounds = array<i64: 2, 1024>}, {pipeline_mode = #tpu.pipeline_mode<synchronous>, transform_indices = @transform_2, window_bounds = array<i64: 1304, 128>}, {transform_indices = @transform_3, window_bounds = array<i64: 2, 128>}]} {
    %c0 = arith.constant 0 : index
    %c0_0 = arith.constant 0 : index
    %0 = vector.load %arg1[%c0, %c0_0] : memref<2x128xbf16, #tpu.memory_space<vmem>>, vector<2x128xbf16>
    %1 = arith.extf %0 : vector<2x128xbf16> to vector<2x128xf32>
    %c0_1 = arith.constant 0 : index
    %c0_2 = arith.constant 0 : index
    %2 = vector.load %arg3[%c0_1, %c0_2] : memref<1304x128xf32, #tpu.memory_space<vmem>>, vector<128x128xf32>
    %cst = arith.constant dense<0.000000e+00> : vector<2x128xf32>
    %3 = tpu.matmul %1, %2, %cst {dimension_numbers = #tpu.dot_dimension_numbers<[1], [0], [0], [1], [0, 0, 1, 1], [], []>} : vector<2x128xf32>, vector<128x128xf32>, vector<2x128xf32> -> vector<2x128xf32>
    %c0_3 = arith.constant 0 : index
    %c0_4 = arith.constant 0 : index
    %4 = vector.load %arg2[%c0_3, %c0_4] : memref<2x1024xbf16, #tpu.memory_space<vmem>>, vector<2x1024xbf16>
    %5 = arith.extf %4 : vector<2x1024xbf16> to vector<2x1024xf32>
    %c128 = arith.constant 128 : index
    %c0_5 = arith.constant 0 : index
    %6 = vector.load %arg3[%c128, %c0_5] : memref<1304x128xf32, #tpu.memory_space<vmem>>, vector<1024x128xf32>
    %c1152 = arith.constant 1152 : index
    %c0_6 = arith.constant 0 : index
    %7 = vector.load %arg3[%c1152, %c0_6] : memref<1304x128xf32, #tpu.memory_space<vmem>>, vector<1x128xf32>
    %cst_7 = arith.constant dense<0.000000e+00> : vector<2x128xf32>
    %8 = tpu.matmul %5, %6, %cst_7 {dimension_numbers = #tpu.dot_dimension_numbers<[1], [0], [0], [1], [0, 0, 1, 1], [], []>} : vector<2x1024xf32>, vector<1024x128xf32>, vector<2x128xf32> -> vector<2x128xf32>
    %9 = vector.broadcast %7 : vector<1x128xf32> to vector<2x128xf32>
    %10 = arith.addf %8, %9 : vector<2x128xf32>
    %cst_8 = arith.constant 0.000000e+00 : f32
    %11 = vector.broadcast %cst_8 : f32 to vector<2x128xf32>
    %12 = arith.maximumf %10, %11 : vector<2x128xf32>
    %c1160 = arith.constant 1160 : index
    %c0_9 = arith.constant 0 : index
    %13 = vector.load %arg3[%c1160, %c0_9] : memref<1304x128xf32, #tpu.memory_space<vmem>>, vector<128x128xf32>
    %cst_10 = arith.constant dense<0.000000e+00> : vector<2x128xf32>
    %14 = tpu.matmul %12, %13, %cst_10 {dimension_numbers = #tpu.dot_dimension_numbers<[1], [0], [0], [1], [0, 0, 1, 1], [], []>} : vector<2x128xf32>, vector<128x128xf32>, vector<2x128xf32> -> vector<2x128xf32>
    %c1288 = arith.constant 1288 : index
    %c0_11 = arith.constant 0 : index
    %15 = vector.load %arg3[%c1288, %c0_11] : memref<1304x128xf32, #tpu.memory_space<vmem>>, vector<1x128xf32>
    %16 = arith.addf %3, %14 : vector<2x128xf32>
    %17 = vector.broadcast %15 : vector<1x128xf32> to vector<2x128xf32>
    %18 = arith.addf %16, %17 : vector<2x128xf32>
    %c0_12 = arith.constant 0 : index
    %c0_13 = arith.constant 0 : index
    %19 = vector.load %arg4[%c0_12, %c0_13] : memref<2x128xf32, #tpu.memory_space<vmem>>, vector<2x128xf32>
    tpu.vector_store %arg4[%c0_12, %c0_13], %18 {strides = array<i32>} : memref<2x128xf32, #tpu.memory_space<vmem>>, vector<2x128xf32>,
    return
  }
  func.func @transform_0(%arg0: i32) -> (i32, i32) {
    %c0_i32 = arith.constant 0 : i32
    %c0_i32_0 = arith.constant 0 : i32
    return %arg0, %c0_i32 : i32, i32
  }
  func.func @transform_1(%arg0: i32) -> (i32, i32) {
    %c0_i32 = arith.constant 0 : i32
    %c0_i32_0 = arith.constant 0 : i32
    return %arg0, %c0_i32 : i32, i32
  }
  func.func @transform_2(%arg0: i32) -> (i32, i32) {
    %c0_i32 = arith.constant 0 : i32
    %c0_i32_0 = arith.constant 0 : i32
    %c0_i32_1 = arith.constant 0 : i32
    return %c0_i32, %c0_i32_0 : i32, i32
  }
  func.func @transform_3(%arg0: i32) -> (i32, i32) {
    %c0_i32 = arith.constant 0 : i32
    %c0_i32_0 = arith.constant 0 : i32
    return %arg0, %c0_i32 : i32, i32
  }
}

</mosaic_0001>

<llo_original>
// kernel: tpu_custom_call.1
$region0: #{tpu_custom_call.1}
  #allocation0 [shape = 'u32[]', space=smem, size = 0x4, offset = 0x4, fixed_abs, tag = 'smem constant byte address 0x4 - core index']
  #allocation1 [shape = 'u32[72,128]{1,0:T(1,128)}', space=vmem, size = 0x9000, scoped, tag = 'internal scratch']
  %s0 = inlined_call_operand.hbm [shape: bf16[2,128], index: 0, kind: input, shape index: {}]
  %s1 = inlined_call_operand.hbm [shape: bf16[2,1024], index: 1, kind: input, shape index: {}]
  %s2 = inlined_call_operand.hbm [shape: f32[1304,128], index: 2, kind: input, shape index: {}]
  %s3 = inlined_call_operand.hbm [shape: f32[2,128], index: 3, kind: output, shape index: {}]
  %s4 = sld [smem:[#allocation0]]
  $region34: #{tpu_custom_call.1} parent=0
    _
  %s6 = ssub.s32 1, %s4
  %s7 = scalar_select 0, %s6, %s4
  $region1: #{tpu_custom_call.1} parent=0
    #allocation2 [shape = 'u8[512]{0}', space=vmem, size = 0x400, scoped, tag = 'input window, operand 0, single buffered']
    #allocation3 [shape = 's32[1]{0}', space=sflag, size = 0x4, scoped, tag = 'scoped memory for tpu_custom_call.1']
    #allocation4 [shape = 's32[1]{0}', space=sflag, size = 0x4, scoped, tag = 'scoped memory for tpu_custom_call.1']
    #allocation5 [shape = 'u8[4096]{0}', space=vmem, size = 0x1000, scoped, tag = 'input window, operand 1, single buffered']
    #allocation6 [shape = 's32[1]{0}', space=sflag, size = 0x4, scoped, tag = 'scoped memory for tpu_custom_call.1']
    #allocation7 [shape = 'u8[667648]{0}', space=vmem, size = 0xa3000, scoped, tag = 'input window, operand 2, single buffered']
    #allocation8 [shape = 'u8[1024]{0}', space=vmem, size = 0x400, scoped, tag = 'output window, operand 0, single buffered']
    %8 = vsyncpa [#allocation3], 0
    %9 = vsyncpa [#allocation6], 0
    %10 = vsyncpa [#allocation4], 0
    // Predicated region
    $region2: #{tpu_custom_call.1} parent=1 // pred_check
      _
    $region3: #{tpu_custom_call.1} parent=1 // pred_check_branch
      %12 = sbr.rel (0) target = $region5
    $region4: #{tpu_custom_call.1} parent=1 // pred_region
      %14 = vsyncadd [#allocation3], 0
      %s16 = sshll.u32 %s0, 4
      %s17 = int_to_ptr.hbm [resolvable:$true] %s16
      %s18 = sshll.u32 [#allocation2], 4
      %s19 = int_to_ptr.vmem [resolvable:$true] %s18
      %21 = dma.hbm_to_vmem [thread:$0]  %s17, 16, %s19, [#allocation3]
    $region5: #{tpu_custom_call.1} parent=1 // pred_fallthru
      _
    // Predicated region
    $region6: #{tpu_custom_call.1} parent=1 // pred_check
      _
    $region7: #{tpu_custom_call.1} parent=1 // pred_check_branch
      %23 = sbr.rel (0) target = $region9
    $region8: #{tpu_custom_call.1} parent=1 // pred_region
      %25 = vsyncadd [#allocation6], 0
      %s27 = sshll.u32 %s1, 4
      %s28 = int_to_ptr.hbm [resolvable:$true] %s27
      %s29 = sshll.u32 [#allocation5], 4
      %s30 = int_to_ptr.vmem [resolvable:$true] %s29
      %32 = dma.hbm_to_vmem [thread:$0]  %s28, 128, %s30, [#allocation6]
    $region9: #{tpu_custom_call.1} parent=1 // pred_fallthru
      _
    // Predicated region
    $region10: #{tpu_custom_call.1} parent=1 // pred_check
      _
    $region11: #{tpu_custom_call.1} parent=1 // pred_check_branch
      %34 = sbr.rel (0) target = $region13
    $region12: #{tpu_custom_call.1} parent=1 // pred_region
      %36 = vsyncadd [#allocation6], 0
      %s37 = sshll.u32 %s2, 4
      %s38 = int_to_ptr.hbm [resolvable:$true] %s37
      %s39 = sshll.u32 [#allocation7], 4
      %s40 = int_to_ptr.vmem [resolvable:$true] %s39
      %45 = dma.hbm_to_vmem [thread:$0]  %s38, 20864, %s40, [#allocation6], 128, 128, 8
    $region13: #{tpu_custom_call.1} parent=1 // pred_fallthru
      _
    // Predicated region
    $region14: #{tpu_custom_call.1} parent=1 // pred_check
      _
    $region15: #{tpu_custom_call.1} parent=1 // pred_check_branch
      %47 = sbr.rel (0) target = $region17
    $region16: #{tpu_custom_call.1} parent=1 // pred_region
      %49 = dma.done [#allocation3], 16
    $region17: #{tpu_custom_call.1} parent=1 // pred_fallthru
      _
    // Predicated region
    $region18: #{tpu_custom_call.1} parent=1 // pred_check
      _
    $region19: #{tpu_custom_call.1} parent=1 // pred_check_branch
      %51 = sbr.rel (0) target = $region21
    $region20: #{tpu_custom_call.1} parent=1 // pred_region
      %53 = dma.done [#allocation6], 128
    $region21: #{tpu_custom_call.1} parent=1 // pred_fallthru
      _
    // Predicated region
    $region22: #{tpu_custom_call.1} parent=1 // pred_check
      _
    $region23: #{tpu_custom_call.1} parent=1 // pred_check_branch
      %55 = sbr.rel (0) target = $region25
    $region24: #{tpu_custom_call.1} parent=1 // pred_region
      %57 = dma.done [#allocation6], 20864
    $region25: #{tpu_custom_call.1} parent=1 // pred_fallthru
      _
    %v58 = vld [vmem:[#allocation2] sm:$0x1]
    %v59 = vunpack.c.l.bf16 %v58
    %v60 = vld [vmem:[#allocation7] sm:$0xff]
    %v61 = vld [vmem:[#allocation7 + $0x8] sm:$0xff]
    %v62 = vld [vmem:[#allocation7 + $0x10] sm:$0xff]
    %v63 = vld [vmem:[#allocation7 + $0x18] sm:$0xff]
    %v64 = vld [vmem:[#allocation7 + $0x20] sm:$0xff]
    %v65 = vld [vmem:[#allocation7 + $0x28] sm:$0xff]
    %v66 = vld [vmem:[#allocation7 + $0x30] sm:$0xff]
    %v67 = vld [vmem:[#allocation7 + $0x38] sm:$0xff]
    %v68 = vld [vmem:[#allocation7 + $0x40] sm:$0xff]
    %v69 = vld [vmem:[#allocation7 + $0x48] sm:$0xff]
    %v70 = vld [vmem:[#allocation7 + $0x50] sm:$0xff]
    %v71 = vld [vmem:[#allocation7 + $0x58] sm:$0xff]
    %v72 = vld [vmem:[#allocation7 + $0x60] sm:$0xff]
    %v73 = vld [vmem:[#allocation7 + $0x68] sm:$0xff]
    %v74 = vld [vmem:[#allocation7 + $0x70] sm:$0xff]
    %v75 = vld [vmem:[#allocation7 + $0x78] sm:$0xff]
    %v76 = vld [vmem:[#allocation5] sm:$0xff]
    %v77 = vunpack.c.l.bf16 %v76
    %v78 = vunpack.c.h.bf16 %v76
    %v79 = vld [vmem:[#allocation7 + $0x80] sm:$0xff]
    %v80 = vld [vmem:[#allocation7 + $0x88] sm:$0xff]
    %v81 = vld [vmem:[#allocation7 + $0x90] sm:$0xff]
    %v82 = vld [vmem:[#allocation7 + $0x98] sm:$0xff]
    %v83 = vld [vmem:[#allocation7 + $0xa0] sm:$0xff]
    %v84 = vld [vmem:[#allocation7 + $0xa8] sm:$0xff]
    %v85 = vld [vmem:[#allocation7 + $0xb0] sm:$0xff]
    %v86 = vld [vmem:[#allocation7 + $0xb8] sm:$0xff]
    %v87 = vld [vmem:[#allocation7 + $0xc0] sm:$0xff]
    %v88 = vld [vmem:[#allocation7 + $0xc8] sm:$0xff]
    %v89 = vld [vmem:[#allocation7 + $0xd0] sm:$0xff]
    %v90 = vld [vmem:[#allocation7 + $0xd8] sm:$0xff]
    %v91 = vld [vmem:[#allocation7 + $0xe0] sm:$0xff]
    %v92 = vld [vmem:[#allocation7 + $0xe8] sm:$0xff]
    %v93 = vld [vmem:[#allocation7 + $0xf0] sm:$0xff]
    %v94 = vld [vmem:[#allocation7 + $0xf8] sm:$0xff]
    %v95 = vld [vmem:[#allocation7 + $0x100] sm:$0xff]
    %v96 = vld [vmem:[#allocation7 + $0x108] sm:$0xff]
    %v97 = vld [vmem:[#allocation7 + $0x110] sm:$0xff]
    %v98 = vld [vmem:[#allocation7 + $0x118] sm:$0xff]
    %v99 = vld [vmem:[#allocation7 + $0x120] sm:$0xff]
    %v100 = vld [vmem:[#allocation7 + $0x128] sm:$0xff]
    %v101 = vld [vmem:[#allocation7 + $0x130] sm:$0xff]
    %v102 = vld [vmem:[#allocation7 + $0x138] sm:$0xff]
    %v103 = vld [vmem:[#allocation7 + $0x140] sm:$0xff]
    %v104 = vld [vmem:[#allocation7 + $0x148] sm:$0xff]
    %v105 = vld [vmem:[#allocation7 + $0x150] sm:$0xff]
    %v106 = vld [vmem:[#allocation7 + $0x158] sm:$0xff]
    %v107 = vld [vmem:[#allocation7 + $0x160] sm:$0xff]
    %v108 = vld [vmem:[#allocation7 + $0x168] sm:$0xff]
    %v109 = vld [vmem:[#allocation7 + $0x170] sm:$0xff]
    %v110 = vld [vmem:[#allocation7 + $0x178] sm:$0xff]
    %v111 = vld [vmem:[#allocation7 + $0x180] sm:$0xff]
    %v112 = vld [vmem:[#allocation7 + $0x188] sm:$0xff]
    %v113 = vld [vmem:[#allocation7 + $0x190] sm:$0xff]
    %v114 = vld [vmem:[#allocation7 + $0x198] sm:$0xff]
    %v115 = vld [vmem:[#allocation7 + $0x1a0] sm:$0xff]
    %v116 = vld [vmem:[#allocation7 + $0x1a8] sm:$0xff]
    %v117 = vld [vmem:[#allocation7 + $0x1b0] sm:$0xff]
    %v118 = vld [vmem:[#allocation7 + $0x1b8] sm:$0xff]
    %v119 = vld [vmem:[#allocation7 + $0x1c0] sm:$0xff]
    %v120 = vld [vmem:[#allocation7 + $0x1c8] sm:$0xff]
    %v121 = vld [vmem:[#allocation7 + $0x1d0] sm:$0xff]
    %v122 = vld [vmem:[#allocation7 + $0x1d8] sm:$0xff]
    %v123 = vld [vmem:[#allocation7 + $0x1e0] sm:$0xff]
    %v124 = vld [vmem:[#allocation7 + $0x1e8] sm:$0xff]
    %v125 = vld [vmem:[#allocation7 + $0x1f0] sm:$0xff]
    %v126 = vld [vmem:[#allocation7 + $0x1f8] sm:$0xff]
    %v127 = vld [vmem:[#allocation7 + $0x200] sm:$0xff]
    %v128 = vld [vmem:[#allocation7 + $0x208] sm:$0xff]
    %v129 = vld [vmem:[#allocation7 + $0x210] sm:$0xff]
    %v130 = vld [vmem:[#allocation7 + $0x218] sm:$0xff]
    %v131 = vld [vmem:[#allocation7 + $0x220] sm:$0xff]
    %v132 = vld [vmem:[#allocation7 + $0x228] sm:$0xff]
    %v133 = vld [vmem:[#allocation7 + $0x230] sm:$0xff]
    %v134 = vld [vmem:[#allocation7 + $0x238] sm:$0xff]
    %v135 = vld [vmem:[#allocation7 + $0x240] sm:$0xff]
    %v136 = vld [vmem:[#allocation7 + $0x248] sm:$0xff]
    %v137 = vld [vmem:[#allocation7 + $0x250] sm:$0xff]
    %v138 = vld [vmem:[#allocation7 + $0x258] sm:$0xff]
    %v139 = vld [vmem:[#allocation7 + $0x260] sm:$0xff]
    %v140 = vld [vmem:[#allocation7 + $0x268] sm:$0xff]
    %v141 = vld [vmem:[#allocation7 + $0x270] sm:$0xff]
    %v142 = vld [vmem:[#allocation7 + $0x278] sm:$0xff]
    %v143 = vld [vmem:[#allocation7 + $0x280] sm:$0xff]
    %v144 = vld [vmem:[#allocation7 + $0x288] sm:$0xff]
    %v145 = vld [vmem:[#allocation7 + $0x290] sm:$0xff]
    %v146 = vld [vmem:[#allocation7 + $0x298] sm:$0xff]
    %v147 = vld [vmem:[#allocation7 + $0x2a0] sm:$0xff]
    %v148 = vld [vmem:[#allocation7 + $0x2a8] sm:$0xff]
    %v149 = vld [vmem:[#allocation7 + $0x2b0] sm:$0xff]
    %v150 = vld [vmem:[#allocation7 + $0x2b8] sm:$0xff]
    %v151 = vld [vmem:[#allocation7 + $0x2c0] sm:$0xff]
    %v152 = vld [vmem:[#allocation7 + $0x2c8] sm:$0xff]
    %v153 = vld [vmem:[#allocation7 + $0x2d0] sm:$0xff]
    %v154 = vld [vmem:[#allocation7 + $0x2d8] sm:$0xff]
    %v155 = vld [vmem:[#allocation7 + $0x2e0] sm:$0xff]
    %v156 = vld [vmem:[#allocation7 + $0x2e8] sm:$0xff]
    %v157 = vld [vmem:[#allocation7 + $0x2f0] sm:$0xff]
    %v158 = vld [vmem:[#allocation7 + $0x2f8] sm:$0xff]
    %v159 = vld [vmem:[#allocation7 + $0x300] sm:$0xff]
    %v160 = vld [vmem:[#allocation7 + $0x308] sm:$0xff]
    %v161 = vld [vmem:[#allocation7 + $0x310] sm:$0xff]
    %v162 = vld [vmem:[#allocation7 + $0x318] sm:$0xff]
    %v163 = vld [vmem:[#allocation7 + $0x320] sm:$0xff]
    %v164 = vld [vmem:[#allocation7 + $0x328] sm:$0xff]
    %v165 = vld [vmem:[#allocation7 + $0x330] sm:$0xff]
    %v166 = vld [vmem:[#allocation7 + $0x338] sm:$0xff]
    %v167 = vld [vmem:[#allocation7 + $0x340] sm:$0xff]
    %v168 = vld [vmem:[#allocation7 + $0x348] sm:$0xff]
    %v169 = vld [vmem:[#allocation7 + $0x350] sm:$0xff]
    %v170 = vld [vmem:[#allocation7 + $0x358] sm:$0xff]
    %v171 = vld [vmem:[#allocation7 + $0x360] sm:$0xff]
    %v172 = vld [vmem:[#allocation7 + $0x368] sm:$0xff]
    %v173 = vld [vmem:[#allocation7 + $0x370] sm:$0xff]
    %v174 = vld [vmem:[#allocation7 + $0x378] sm:$0xff]
    %v175 = vld [vmem:[#allocation7 + $0x380] sm:$0xff]
    %v176 = vld [vmem:[#allocation7 + $0x388] sm:$0xff]
    %v177 = vld [vmem:[#allocation7 + $0x390] sm:$0xff]
    %v178 = vld [vmem:[#allocation7 + $0x398] sm:$0xff]
    %v179 = vld [vmem:[#allocation7 + $0x3a0] sm:$0xff]
    %v180 = vld [vmem:[#allocation7 + $0x3a8] sm:$0xff]
    %v181 = vld [vmem:[#allocation7 + $0x3b0] sm:$0xff]
    %v182 = vld [vmem:[#allocation7 + $0x3b8] sm:$0xff]
    %v183 = vld [vmem:[#allocation7 + $0x3c0] sm:$0xff]
    %v184 = vld [vmem:[#allocation7 + $0x3c8] sm:$0xff]
    %v185 = vld [vmem:[#allocation7 + $0x3d0] sm:$0xff]
    %v186 = vld [vmem:[#allocation7 + $0x3d8] sm:$0xff]
    %v187 = vld [vmem:[#allocation7 + $0x3e0] sm:$0xff]
    %v188 = vld [vmem:[#allocation7 + $0x3e8] sm:$0xff]
    %v189 = vld [vmem:[#allocation7 + $0x3f0] sm:$0xff]
    %v190 = vld [vmem:[#allocation7 + $0x3f8] sm:$0xff]
    %v191 = vld [vmem:[#allocation7 + $0x400] sm:$0xff]
    %v192 = vld [vmem:[#allocation7 + $0x408] sm:$0xff]
    %v193 = vld [vmem:[#allocation7 + $0x410] sm:$0xff]
    %v194 = vld [vmem:[#allocation7 + $0x418] sm:$0xff]
    %v195 = vld [vmem:[#allocation7 + $0x420] sm:$0xff]
    %v196 = vld [vmem:[#allocation7 + $0x428] sm:$0xff]
    %v197 = vld [vmem:[#allocation7 + $0x430] sm:$0xff]
    %v198 = vld [vmem:[#allocation7 + $0x438] sm:$0xff]
    %v199 = vld [vmem:[#allocation7 + $0x440] sm:$0xff]
    %v200 = vld [vmem:[#allocation7 + $0x448] sm:$0xff]
    %v201 = vld [vmem:[#allocation7 + $0x450] sm:$0xff]
    %v202 = vld [vmem:[#allocation7 + $0x458] sm:$0xff]
    %v203 = vld [vmem:[#allocation7 + $0x460] sm:$0xff]
    %v204 = vld [vmem:[#allocation7 + $0x468] sm:$0xff]
    %v205 = vld [vmem:[#allocation7 + $0x470] sm:$0xff]
    %v206 = vld [vmem:[#allocation7 + $0x478] sm:$0xff]
    %v207 = vld [vmem:[#allocation7 + $0x480] sm:$0x1]
    %v208 = vperm.slane %v207, 0
    %211 = vst [vmem:[#allocation1] ss:$4 sm:$0xff] %v77
    %s212 = scalar_lea.vmem [#allocation1], 32
    %213 = vst [vmem:[%s212] ss:$4 sm:$0xff] %v78
    %v214 = vld.sshfl [vmem:[#allocation1] sm:$0xff pattern:$0x73625140]
    %v215 = vld.sshfl [vmem:[#allocation1 + $0x8] sm:$0xff pattern:$0x73625140]
    %v216 = vld.sshfl [vmem:[#allocation1 + $0x10] sm:$0xff pattern:$0x73625140]
    %v217 = vld.sshfl [vmem:[#allocation1 + $0x18] sm:$0xff pattern:$0x73625140]
    %v218 = vld.sshfl [vmem:[#allocation1 + $0x20] sm:$0xff pattern:$0x73625140]
    %v219 = vld.sshfl [vmem:[#allocation1 + $0x28] sm:$0xff pattern:$0x73625140]
    %v220 = vld.sshfl [vmem:[#allocation1 + $0x30] sm:$0xff pattern:$0x73625140]
    %v221 = vld.sshfl [vmem:[#allocation1 + $0x38] sm:$0xff pattern:$0x73625140]
    %230 = vmatpush.msra.mxu0 %v94
    %231 = vmatpush.msra.mxu0 %v93
    %232 = vmatpush.msra.mxu0 %v92
    %233 = vmatpush.msra.mxu0 %v91
    %234 = vmatpush.msra.mxu0 %v90
    %235 = vmatpush.msra.mxu0 %v89
    %236 = vmatpush.msra.mxu0 %v88
    %237 = vmatpush.msra.mxu0 %v87
    %238 = vmatpush.msra.mxu0 %v86
    %239 = vmatpush.msra.mxu0 %v85
    %240 = vmatpush.msra.mxu0 %v84
    %241 = vmatpush.msra.mxu0 %v83
    %242 = vmatpush.msra.mxu0 %v82
    %243 = vmatpush.msra.mxu0 %v81
    %244 = vmatpush.msra.mxu0 %v80
    %245 = vmatpush.msra.mxu0 %v79
    %246 = vmatmul.f32.gmra.mxu0 %v214
    %v247 = vpop.f32.mrf.mxu0
    %v248 = vadd.f32 %v208, %v247
    %249 = vdwg.mxu0
    %250 = vmatpush.msra.mxu0 %v110
    %251 = vmatpush.msra.mxu0 %v109
    %252 = vmatpush.msra.mxu0 %v108
    %253 = vmatpush.msra.mxu0 %v107
    %254 = vmatpush.msra.mxu0 %v106
    %255 = vmatpush.msra.mxu0 %v105
    %256 = vmatpush.msra.mxu0 %v104
    %257 = vmatpush.msra.mxu0 %v103
    %258 = vmatpush.msra.mxu0 %v102
    %259 = vmatpush.msra.mxu0 %v101
    %260 = vmatpush.msra.mxu0 %v100
    %261 = vmatpush.msra.mxu0 %v99
    %262 = vmatpush.msra.mxu0 %v98
    %263 = vmatpush.msra.mxu0 %v97
    %264 = vmatpush.msra.mxu0 %v96
    %265 = vmatpush.msra.mxu0 %v95
    %266 = vmatmul.f32.gmra.mxu0 %v215
    %v267 = vpop.f32.mrf.mxu0
    %v268 = vadd.f32 %v248, %v267
    %269 = vdwg.mxu0
    %270 = vmatpush.msra.mxu0 %v126
    %271 = vmatpush.msra.mxu0 %v125
    %272 = vmatpush.msra.mxu0 %v124
    %273 = vmatpush.msra.mxu0 %v123
    %274 = vmatpush.msra.mxu0 %v122
    %275 = vmatpush.msra.mxu0 %v121
    %276 = vmatpush.msra.mxu0 %v120
    %277 = vmatpush.msra.mxu0 %v119
    %278 = vmatpush.msra.mxu0 %v118
    %279 = vmatpush.msra.mxu0 %v117
    %280 = vmatpush.msra.mxu0 %v116
    %281 = vmatpush.msra.mxu0 %v115
    %282 = vmatpush.msra.mxu0 %v114
    %283 = vmatpush.msra.mxu0 %v113
    %284 = vmatpush.msra.mxu0 %v112
    %285 = vmatpush.msra.mxu0 %v111
    %286 = vmatmul.f32.gmra.mxu0 %v216
    %v287 = vpop.f32.mrf.mxu0
    %v288 = vadd.f32 %v268, %v287
    %289 = vdwg.mxu0
    %290 = vmatpush.msra.mxu0 %v142
    %291 = vmatpush.msra.mxu0 %v141
    %292 = vmatpush.msra.mxu0 %v140
    %293 = vmatpush.msra.mxu0 %v139
    %294 = vmatpush.msra.mxu0 %v138
    %295 = vmatpush.msra.mxu0 %v137
    %296 = vmatpush.msra.mxu0 %v136
    %297 = vmatpush.msra.mxu0 %v135
    %298 = vmatpush.msra.mxu0 %v134
    %299 = vmatpush.msra.mxu0 %v133
    %300 = vmatpush.msra.mxu0 %v132
    %301 = vmatpush.msra.mxu0 %v131
    %302 = vmatpush.msra.mxu0 %v130
    %303 = vmatpush.msra.mxu0 %v129
    %304 = vmatpush.msra.mxu0 %v128
    %305 = vmatpush.msra.mxu0 %v127
    %306 = vmatmul.f32.gmra.mxu0 %v217
    %v307 = vpop.f32.mrf.mxu0
    %v308 = vadd.f32 %v288, %v307
    %309 = vdwg.mxu0
    %310 = vmatpush.msra.mxu0 %v158
    %311 = vmatpush.msra.mxu0 %v157
    %312 = vmatpush.msra.mxu0 %v156
    %313 = vmatpush.msra.mxu0 %v155
    %314 = vmatpush.msra.mxu0 %v154
    %315 = vmatpush.msra.mxu0 %v153
    %316 = vmatpush.msra.mxu0 %v152
    %317 = vmatpush.msra.mxu0 %v151
    %318 = vmatpush.msra.mxu0 %v150
    %319 = vmatpush.msra.mxu0 %v149
    %320 = vmatpush.msra.mxu0 %v148
    %321 = vmatpush.msra.mxu0 %v147
    %322 = vmatpush.msra.mxu0 %v146
    %323 = vmatpush.msra.mxu0 %v145
    %324 = vmatpush.msra.mxu0 %v144
    %325 = vmatpush.msra.mxu0 %v143
    %326 = vmatmul.f32.gmra.mxu0 %v218
    %v327 = vpop.f32.mrf.mxu0
    %v328 = vadd.f32 %v308, %v327
    %329 = vdwg.mxu0
    %330 = vmatpush.msra.mxu0 %v174
    %331 = vmatpush.msra.mxu0 %v173
    %332 = vmatpush.msra.mxu0 %v172
    %333 = vmatpush.msra.mxu0 %v171
    %334 = vmatpush.msra.mxu0 %v170
    %335 = vmatpush.msra.mxu0 %v169
    %336 = vmatpush.msra.mxu0 %v168
    %337 = vmatpush.msra.mxu0 %v167
    %338 = vmatpush.msra.mxu0 %v166
    %339 = vmatpush.msra.mxu0 %v165
    %340 = vmatpush.msra.mxu0 %v164
    %341 = vmatpush.msra.mxu0 %v163
    %342 = vmatpush.msra.mxu0 %v162
    %343 = vmatpush.msra.mxu0 %v161
    %344 = vmatpush.msra.mxu0 %v160
    %345 = vmatpush.msra.mxu0 %v159
    %346 = vmatmul.f32.gmra.mxu0 %v219
    %v347 = vpop.f32.mrf.mxu0
    %v348 = vadd.f32 %v328, %v347
    %349 = vdwg.mxu0
    %350 = vmatpush.msra.mxu0 %v190
    %351 = vmatpush.msra.mxu0 %v189
    %352 = vmatpush.msra.mxu0 %v188
    %353 = vmatpush.msra.mxu0 %v187
    %354 = vmatpush.msra.mxu0 %v186
    %355 = vmatpush.msra.mxu0 %v185
    %356 = vmatpush.msra.mxu0 %v184
    %357 = vmatpush.msra.mxu0 %v183
    %358 = vmatpush.msra.mxu0 %v182
    %359 = vmatpush.msra.mxu0 %v181
    %360 = vmatpush.msra.mxu0 %v180
    %361 = vmatpush.msra.mxu0 %v179
    %362 = vmatpush.msra.mxu0 %v178
    %363 = vmatpush.msra.mxu0 %v177
    %364 = vmatpush.msra.mxu0 %v176
    %365 = vmatpush.msra.mxu0 %v175
    %366 = vmatmul.f32.gmra.mxu0 %v220
    %v367 = vpop.f32.mrf.mxu0
    %v368 = vadd.f32 %v348, %v367
    %369 = vdwg.mxu0
    %370 = vmatpush.msra.mxu0 %v206
    %371 = vmatpush.msra.mxu0 %v205
    %372 = vmatpush.msra.mxu0 %v204
    %373 = vmatpush.msra.mxu0 %v203
    %374 = vmatpush.msra.mxu0 %v202
    %375 = vmatpush.msra.mxu0 %v201
    %376 = vmatpush.msra.mxu0 %v200
    %377 = vmatpush.msra.mxu0 %v199
    %378 = vmatpush.msra.mxu0 %v198
    %379 = vmatpush.msra.mxu0 %v197
    %380 = vmatpush.msra.mxu0 %v196
    %381 = vmatpush.msra.mxu0 %v195
    %382 = vmatpush.msra.mxu0 %v194
    %383 = vmatpush.msra.mxu0 %v193
    %384 = vmatpush.msra.mxu0 %v192
    %385 = vmatpush.msra.mxu0 %v191
    %386 = vmatmul.f32.gmra.mxu0 %v221
    %v387 = vpop.f32.mrf.mxu0
    %v388 = vadd.f32 %v368, %v387
    %389 = vdwg.mxu0
    %v390 = vmax.f32 %v388, 0.0
    %v391 = vld [vmem:[#allocation7 + $0x488] sm:$0xff]
    %v392 = vld [vmem:[#allocation7 + $0x490] sm:$0xff]
    %v393 = vld [vmem:[#allocation7 + $0x498] sm:$0xff]
    %v394 = vld [vmem:[#allocation7 + $0x4a0] sm:$0xff]
    %v395 = vld [vmem:[#allocation7 + $0x4a8] sm:$0xff]
    %v396 = vld [vmem:[#allocation7 + $0x4b0] sm:$0xff]
    %v397 = vld [vmem:[#allocation7 + $0x4b8] sm:$0xff]
    %v398 = vld [vmem:[#allocation7 + $0x4c0] sm:$0xff]
    %v399 = vld [vmem:[#allocation7 + $0x4c8] sm:$0xff]
    %v400 = vld [vmem:[#allocation7 + $0x4d0] sm:$0xff]
    %v401 = vld [vmem:[#allocation7 + $0x4d8] sm:$0xff]
    %v402 = vld [vmem:[#allocation7 + $0x4e0] sm:$0xff]
    %v403 = vld [vmem:[#allocation7 + $0x4e8] sm:$0xff]
    %v404 = vld [vmem:[#allocation7 + $0x4f0] sm:$0xff]
    %v405 = vld [vmem:[#allocation7 + $0x4f8] sm:$0xff]
    %v406 = vld [vmem:[#allocation7 + $0x500] sm:$0xff]
    %407 = vmatpush.msra.mxu0 %v406
    %408 = vmatpush.msra.mxu0 %v405
    %409 = vmatpush.msra.mxu0 %v404
    %410 = vmatpush.msra.mxu0 %v403
    %411 = vmatpush.msra.mxu0 %v402
    %412 = vmatpush.msra.mxu0 %v401
    %413 = vmatpush.msra.mxu0 %v400
    %414 = vmatpush.msra.mxu0 %v399
    %415 = vmatpush.msra.mxu0 %v398
    %416 = vmatpush.msra.mxu0 %v397
    %417 = vmatpush.msra.mxu0 %v396
    %418 = vmatpush.msra.mxu0 %v395
    %419 = vmatpush.msra.mxu0 %v394
    %420 = vmatpush.msra.mxu0 %v393
    %421 = vmatpush.msra.mxu0 %v392
    %422 = vmatpush.msra.mxu0 %v391
    %423 = vmatmul.f32.gmra.mxu0 %v390
    %v424 = vpop.f32.mrf.mxu0
    %v425 = vadd.f32 0.0, %v424
    %426 = vdwg.mxu0
    %v427 = vld [vmem:[#allocation7 + $0x508] sm:$0x1]
    %428 = vmatpush.msra.mxu0 %v75
    %429 = vmatpush.msra.mxu0 %v74
    %430 = vmatpush.msra.mxu0 %v73
    %431 = vmatpush.msra.mxu0 %v72
    %432 = vmatpush.msra.mxu0 %v71
    %433 = vmatpush.msra.mxu0 %v70
    %434 = vmatpush.msra.mxu0 %v69
    %435 = vmatpush.msra.mxu0 %v68
    %436 = vmatpush.msra.mxu0 %v67
    %437 = vmatpush.msra.mxu0 %v66
    %438 = vmatpush.msra.mxu0 %v65
    %439 = vmatpush.msra.mxu0 %v64
    %440 = vmatpush.msra.mxu0 %v63
    %441 = vmatpush.msra.mxu0 %v62
    %442 = vmatpush.msra.mxu0 %v61
    %443 = vmatpush.msra.mxu0 %v60
    %444 = vmatmul.f32.gmra.mxu0 %v59
    %v445 = vpop.f32.mrf.mxu0
    %v446 = vadd.f32 %v425, %v445
    %447 = vdwg.mxu0
    %v448 = vperm.slane %v427, 0
    %v449 = vadd.f32 %v446, %v448
    %450 = vst [vmem:[#allocation8] sm:$0x3] %v449
    // Predicated region
    $region26: #{tpu_custom_call.1} parent=1 // pred_check
      _
    $region27: #{tpu_custom_call.1} parent=1 // pred_check_branch
      %452 = sbr.rel (0) target = $region29
    $region28: #{tpu_custom_call.1} parent=1 // pred_region
      %454 = vsyncadd [#allocation4], 0
      %s456 = sshll.u32 [#allocation8], 4
      %s457 = int_to_ptr.vmem [resolvable:$true] %s456
      %s458 = sshll.u32 %s3, 4
      %s459 = int_to_ptr.hbm [resolvable:$true] %s458
      %461 = dma.vmem_to_hbm [thread:$0]  %s457, 32, %s459, [#allocation4]
    $region29: #{tpu_custom_call.1} parent=1 // pred_fallthru
      _
    // Predicated region
    $region30: #{tpu_custom_call.1} parent=1 // pred_check
      _
    $region31: #{tpu_custom_call.1} parent=1 // pred_check_branch
      %463 = sbr.rel (0) target = $region33
    $region32: #{tpu_custom_call.1} parent=1 // pred_region
      %465 = dma.done [#allocation4], 32
    $region33: #{tpu_custom_call.1} parent=1 // pred_fallthru
      _
    %466 = vsyncpa [#allocation3], 1
    %467 = vsyncpa [#allocation6], 1
    %468 = vsyncpa [#allocation4], 1

</llo_original>
